<compile_context>
chip_gen: v6e
topology: v6e:2x2x1
jax: 0.10.0
libtpu: 0.0.40
codegen_flags: <defaults>
</compile_context>

<pallas_src>
import functools

import jax
import jax.numpy as jnp
from jax.experimental import pallas as pl
from jax.experimental.pallas import tpu as pltpu


def _round_up(x: int, m: int) -> int:
    return ((x + m - 1) // m) * m


def _focal_loss_kernel(logits_ref, targets_ref, alpha_t_ref, out_ref, *,
                       gamma: float, size_average: bool,
                       n_total: int, tile_n: int):
    i = pl.program_id(0)

    # ---- init accumulator on the first tile --------------------------------
    @pl.when(i == 0)
    def _():
        out_ref[...] = jnp.zeros_like(out_ref)

    x = logits_ref[...].astype(jnp.float32)        # (tile_n, C)
    t = targets_ref[...]                           # (tile_n, 1) int32
    a_t = alpha_t_ref[...].astype(jnp.float32)     # (tile_n, 1)
    tn, c = x.shape

    # ---- log-softmax over the class dim (dim=1 in the PyTorch reference) ---
    x_max = jnp.max(x, axis=1, keepdims=True)
    shifted = x - x_max
    lse = jnp.log(jnp.sum(jnp.exp(shifted), axis=1, keepdims=True))  # (tile_n,1)

    # one-hot class mask (scatter equivalent: iota == target)
    col = jax.lax.broadcasted_iota(jnp.int32, (tn, c), 1)
    mask = (col == t).astype(jnp.float32)                            # (tile_n,C)

    s_t = jnp.sum(shifted * mask, axis=1, keepdims=True)             # (tile_n,1)
    log_p = s_t - lse                                                # log P[target]
    probs = jnp.exp(log_p)                                           # P[target]

    # ---- (1 - p)^gamma, strength-reduced for static integer gamma ----------
    one_minus_p = 1.0 - probs
    g = float(gamma)
    if g.is_integer() and 0 <= int(g) <= 8:
        gi = int(g)
        if gi == 0:
            w = jnp.ones_like(one_minus_p)
        else:
            w = one_minus_p
            for _ in range(gi - 1):
                w = w * one_minus_p
    else:
        w = jnp.power(one_minus_p, g)

    batch_loss = -a_t * w * log_p                                    # (tile_n,1)

    # ---- mask rows past the true batch size (ragged last tile) -------------
    row = jax.lax.broadcasted_iota(jnp.int32, (tn, 1), 0) + i * tile_n
    batch_loss = jnp.where(row < n_total, batch_loss, 0.0)

    out_ref[...] += jnp.sum(batch_loss)

    # ---- finalize on the last tile ------------------------------------------
    @pl.when(i == pl.num_programs(0) - 1)
    def _():
        if size_average:
            out_ref[...] = out_ref[...] * jnp.float32(1.0 / n_total)


def focal_loss(logits, targets, alpha, *, gamma=2.0, size_average=True,
               tile_rows=None):
    """logits: (N, C) float (f32 or bf16), targets: (N,) int, alpha: (C,) float."""
    n, c = logits.shape
    targets = targets.astype(jnp.int32)
    targets2d = targets.reshape(n, 1)

    alpha = jnp.asarray(alpha, dtype=jnp.float32).reshape(-1)
    # per-row alpha gathered outside the kernel: (N, 1) extra input is
    # negligible HBM traffic and saves one (N, C) masked reduce per tile.
    alpha_t = alpha[targets].reshape(n, 1)

    itemsize = jnp.dtype(logits.dtype).itemsize
    if tile_rows is None:
        # ~2 MiB logits tile: double-buffered this stays far below the scoped
        # VMEM defaults of every generation (16/32/32 MiB on v5e/v6e/v7x) while
        # being large enough to sit near the HBM roofline.
        target_bytes = 2 * 1024 * 1024
        tile_rows = max(8, target_bytes // max(1, c * itemsize))
    tile_n = min(_round_up(n, 8), _round_up(int(tile_rows), 8))
    num_tiles = (n + tile_n - 1) // tile_n

    kernel = functools.partial(_focal_loss_kernel,
                               gamma=float(gamma),
                               size_average=bool(size_average),
                               n_total=int(n),
                               tile_n=int(tile_n))

    out = pl.pallas_call(
        kernel,
        out_shape=jax.ShapeDtypeStruct((1, 1), jnp.float32),
        grid=(num_tiles,),
        in_specs=[
            pl.BlockSpec((tile_n, c), lambda i: (i, 0)),   # logits tile
            pl.BlockSpec((tile_n, 1), lambda i: (i, 0)),   # targets tile
            pl.BlockSpec((tile_n, 1), lambda i: (i, 0)),   # alpha[targets] tile
        ],
        # resident scalar accumulator: same block for every grid step
        out_specs=pl.BlockSpec((1, 1), lambda i: (0, 0)),
        compiler_params=pltpu.CompilerParams(
            dimension_semantics=("arbitrary",),      # accumulator => serial axis
            vmem_limit_bytes=32 * 1024 * 1024,
        ),
    )(logits, targets2d, alpha_t)
    return out[0, 0]


def _focal_loss_ref(logits, targets, alpha, gamma=2.0, size_average=True):
    # pure-JAX reference mirroring the PyTorch forward
    p = jax.nn.softmax(logits.astype(jnp.float32), axis=1)
    n, c = logits.shape
    mask = jax.nn.one_hot(targets, c, dtype=jnp.float32)
    probs = jnp.sum(p * mask, axis=1, keepdims=True)
    alpha_t = jnp.asarray(alpha, jnp.float32)[targets].reshape(-1, 1)
    batch_loss = -alpha_t * jnp.power(1.0 - probs, gamma) * jnp.log(probs)
    return jnp.mean(batch_loss) if size_average else jnp.sum(batch_loss)


if __name__ == "__main__":
    key = jax.random.PRNGKey(0)

    # --- test 1: module defaults (num_classes=3, alpha=ones, mean) ----------
    num_classes, batch, gamma = 3, 8, 2.0
    k_logits, k_targets, key = jax.random.split(key, 3)
    logits = jax.random.normal(k_logits, (batch, num_classes), dtype=jnp.float32)
    targets = jax.random.randint(k_targets, (batch,), 0, num_classes, dtype=jnp.int32)
    alpha = jnp.ones((num_classes,), dtype=jnp.float32)

    loss = focal_loss(logits, targets, alpha, gamma=gamma, size_average=True)
    jax.block_until_ready(loss)
    ref = _focal_loss_ref(logits, targets, alpha, gamma=gamma, size_average=True)
    assert jnp.allclose(loss, ref, rtol=1e-5, atol=1e-6), (loss, ref)

    # --- test 2: multi-tile grid + ragged last tile + sum reduction ---------
    num_classes2, batch2 = 5, 37            # N not a multiple of the tile size
    k_logits2, k_targets2, k_alpha2, key = jax.random.split(key, 4)
    logits2 = jax.random.normal(k_logits2, (batch2, num_classes2), dtype=jnp.float32)
    targets2 = jax.random.randint(k_targets2, (batch2,), 0, num_classes2,
                                  dtype=jnp.int32)
    alpha2 = jax.random.uniform(k_alpha2, (num_classes2,), dtype=jnp.float32,
                                minval=0.25, maxval=1.0)

    loss2 = focal_loss(logits2, targets2, alpha2, gamma=gamma,
                       size_average=False, tile_rows=16)   # force 3 tiles
    jax.block_until_ready(loss2)
    ref2 = _focal_loss_ref(logits2, targets2, alpha2, gamma=gamma,
                           size_average=False)
    assert jnp.allclose(loss2, ref2, rtol=1e-5, atol=1e-5), (loss2, ref2)

    print("KERNEL_OK")
</pallas_src>

<mosaic_0001>
module attributes {stable_mosaic.version = 11 : i64} {
  func.func @_focal_loss_kernel(%arg0: i32, %arg1: memref<8x3xf32, #tpu.memory_space<vmem>>, %arg2: memref<8x1xi32, #tpu.memory_space<vmem>>, %arg3: memref<8x1xf32, #tpu.memory_space<vmem>>, %arg4: memref<1x1xf32, #tpu.memory_space<vmem>>) attributes {dimension_semantics = [#tpu.dimension_semantics<arbitrary>], iteration_bounds = array<i64: 1>, scalar_prefetch = 0 : i64, scratch_operands = 0 : i64, tpu.core_type = #tpu.core_type<tc>, window_params = [{transform_indices = @transform_0, window_bounds = array<i64: 8, 3>}, {transform_indices = @transform_1, window_bounds = array<i64: 8, 1>}, {transform_indices = @transform_2, window_bounds = array<i64: 8, 1>}, {pipeline_mode = #tpu.pipeline_mode<synchronous>, transform_indices = @transform_3, window_bounds = array<i64: 1, 1>}]} {
    %c0_i32 = arith.constant 0 : i32
    %0 = arith.cmpi eq, %arg0, %c0_i32 : i32
    %1 = arith.extui %0 : i1 to i32
    %c0_i32_0 = arith.constant 0 : i32
    %2 = arith.cmpi ne, %1, %c0_i32_0 : i32
    scf.if %2 {
      %cst_19 = arith.constant 0.000000e+00 : f32
      %50 = vector.broadcast %cst_19 : f32 to vector<1x1xf32>
      %c0_20 = arith.constant 0 : index
      %c0_21 = arith.constant 0 : index
      %51 = vector.load %arg4[%c0_20, %c0_21] : memref<1x1xf32, #tpu.memory_space<vmem>>, vector<1x1xf32>
      tpu.vector_store %arg4[%c0_20, %c0_21], %50 {strides = array<i32>} : memref<1x1xf32, #tpu.memory_space<vmem>>, vector<1x1xf32>,
    } else {
    }
    %c0 = arith.constant 0 : index
    %c0_1 = arith.constant 0 : index
    %3 = vector.load %arg1[%c0, %c0_1] : memref<8x3xf32, #tpu.memory_space<vmem>>, vector<8x3xf32>
    %c0_2 = arith.constant 0 : index
    %c0_3 = arith.constant 0 : index
    %4 = vector.load %arg2[%c0_2, %c0_3] : memref<8x1xi32, #tpu.memory_space<vmem>>, vector<8x1xi32>
    %c0_4 = arith.constant 0 : index
    %c0_5 = arith.constant 0 : index
    %5 = vector.load %arg3[%c0_4, %c0_5] : memref<8x1xf32, #tpu.memory_space<vmem>>, vector<8x1xf32>
    %cst = arith.constant dense<0xFF800000> : vector<8xf32>
    %6 = vector.multi_reduction <maximumf>, %3, %cst [1] : vector<8x3xf32> to vector<8xf32>
    %7 = vector.shape_cast %6 : vector<8xf32> to vector<8x1xf32>
    %8 = vector.broadcast %7 : vector<8x1xf32> to vector<8x3xf32>
    %9 = arith.subf %3, %8 : vector<8x3xf32>
    %10 = math.exp %9 : vector<8x3xf32>
    %cst_6 = arith.constant dense<0.000000e+00> : vector<8xf32>
    %11 = vector.multi_reduction <add>, %10, %cst_6 [1] : vector<8x3xf32> to vector<8xf32>
    %12 = vector.shape_cast %11 : vector<8xf32> to vector<8x1xf32>
    %13 = math.log %12 : vector<8x1xf32>
    %14 = tpu.iota {dimensions = array<i32: 1>} : vector<8x3xi32>
    %15 = vector.broadcast %4 : vector<8x1xi32> to vector<8x3xi32>
    %16 = arith.cmpi eq, %14, %15 : vector<8x3xi32>
    %17 = arith.extui %16 : vector<8x3xi1> to vector<8x3xi32>
    %18 = arith.sitofp %17 : vector<8x3xi32> to vector<8x3xf32>
    %19 = arith.mulf %9, %18 : vector<8x3xf32>
    %cst_7 = arith.constant dense<0.000000e+00> : vector<8xf32>
    %20 = vector.multi_reduction <add>, %19, %cst_7 [1] : vector<8x3xf32> to vector<8xf32>
    %21 = vector.shape_cast %20 : vector<8xf32> to vector<8x1xf32>
    %22 = arith.subf %21, %13 : vector<8x1xf32>
    %23 = math.exp %22 : vector<8x1xf32>
    %cst_8 = arith.constant 1.000000e+00 : f32
    %24 = vector.broadcast %cst_8 : f32 to vector<8x1xf32>
    %25 = arith.subf %24, %23 : vector<8x1xf32>
    %26 = arith.mulf %25, %25 : vector<8x1xf32>
    %cst_9 = arith.constant 0.000000e+00 : f32
    %27 = vector.broadcast %cst_9 : f32 to vector<8x1xf32>
    %28 = arith.subf %27, %5 : vector<8x1xf32>
    %29 = arith.mulf %28, %26 : vector<8x1xf32>
    %30 = arith.mulf %29, %22 : vector<8x1xf32>
    %31 = tpu.iota {dimensions = array<i32: 0>} : vector<8x1xi32>
    %c8_i32 = arith.constant 8 : i32
    %32 = arith.muli %arg0, %c8_i32 : i32
    %33 = vector.broadcast %32 : i32 to vector<8x1xi32>
    %34 = arith.addi %31, %33 : vector<8x1xi32>
    %c8_i32_10 = arith.constant 8 : i32
    %35 = vector.broadcast %c8_i32_10 : i32 to vector<8x1xi32>
    %36 = arith.cmpi slt, %34, %35 : vector<8x1xi32>
    %cst_11 = arith.constant 0.000000e+00 : f32
    %37 = vector.broadcast %cst_11 : f32 to vector<8x1xf32>
    %38 = arith.select %36, %30, %37 : vector<8x1xi1>, vector<8x1xf32>
    %c0_12 = arith.constant 0 : index
    %c0_13 = arith.constant 0 : index
    %39 = vector.load %arg4[%c0_12, %c0_13] : memref<1x1xf32, #tpu.memory_space<vmem>>, vector<1x1xf32>
    %40 = vector.shape_cast %38 : vector<8x1xf32> to vector<1x8x1xf32>
    %cst_14 = arith.constant dense<0.000000e+00> : vector<1xf32>
    %41 = vector.multi_reduction <add>, %40, %cst_14 [1, 2] : vector<1x8x1xf32> to vector<1xf32>
    %42 = vector.shape_cast %41 : vector<1xf32> to vector<1x1x1xf32>
    %43 = vector.extract %42[0, 0, 0] : f32 from vector<1x1x1xf32>
    %44 = vector.broadcast %43 : f32 to vector<1x1xf32>
    %45 = arith.addf %39, %44 : vector<1x1xf32>
    %c0_15 = arith.constant 0 : index
    %c0_16 = arith.constant 0 : index
    %46 = vector.load %arg4[%c0_15, %c0_16] : memref<1x1xf32, #tpu.memory_space<vmem>>, vector<1x1xf32>
    tpu.vector_store %arg4[%c0_15, %c0_16], %45 {strides = array<i32>} : memref<1x1xf32, #tpu.memory_space<vmem>>, vector<1x1xf32>,
    %c0_i32_17 = arith.constant 0 : i32
    %47 = arith.cmpi eq, %arg0, %c0_i32_17 : i32
    %48 = arith.extui %47 : i1 to i32
    %c0_i32_18 = arith.constant 0 : i32
    %49 = arith.cmpi ne, %48, %c0_i32_18 : i32
    scf.if %49 {
      %c0_19 = arith.constant 0 : index
      %c0_20 = arith.constant 0 : index
      %50 = vector.load %arg4[%c0_19, %c0_20] : memref<1x1xf32, #tpu.memory_space<vmem>>, vector<1x1xf32>
      %cst_21 = arith.constant 1.250000e-01 : f32
      %51 = vector.broadcast %cst_21 : f32 to vector<1x1xf32>
      %52 = arith.mulf %50, %51 : vector<1x1xf32>
      %c0_22 = arith.constant 0 : index
      %c0_23 = arith.constant 0 : index
      %53 = vector.load %arg4[%c0_22, %c0_23] : memref<1x1xf32, #tpu.memory_space<vmem>>, vector<1x1xf32>
      tpu.vector_store %arg4[%c0_22, %c0_23], %52 {strides = array<i32>} : memref<1x1xf32, #tpu.memory_space<vmem>>, vector<1x1xf32>,
    } else {
    }
    return
  }
  func.func @transform_0(%arg0: i32) -> (i32, i32) {
    %c0_i32 = arith.constant 0 : i32
    %c0_i32_0 = arith.constant 0 : i32
    return %arg0, %c0_i32 : i32, i32
  }
  func.func @transform_1(%arg0: i32) -> (i32, i32) {
    %c0_i32 = arith.constant 0 : i32
    %c0_i32_0 = arith.constant 0 : i32
    return %arg0, %c0_i32 : i32, i32
  }
  func.func @transform_2(%arg0: i32) -> (i32, i32) {
    %c0_i32 = arith.constant 0 : i32
    %c0_i32_0 = arith.constant 0 : i32
    return %arg0, %c0_i32 : i32, i32
  }
  func.func @transform_3(%arg0: i32) -> (i32, i32) {
    %c0_i32 = arith.constant 0 : i32
    %c0_i32_0 = arith.constant 0 : i32
    %c0_i32_1 = arith.constant 0 : i32
    return %c0_i32, %c0_i32_0 : i32, i32
  }
}

</mosaic_0001>

<llo_original>
// kernel: tpu_custom_call.1
$region0: #{tpu_custom_call.1}
  #allocation0 [shape = 'u32[]', space=smem, size = 0x4, offset = 0x4, fixed_abs, tag = 'smem constant byte address 0x4 - core index']
  #allocation1 [shape = 'u32[144,128]{1,0:T(1,128)}', space=vmem, size = 0x12000, scoped, tag = 'internal scratch']
  %s0 = inlined_call_operand.vmem [shape: f32[8,3], index: 0, kind: input, shape index: {}]
  %s1 = inlined_call_operand.vmem [shape: s32[8,1], index: 1, kind: input, shape index: {}]
  %s2 = inlined_call_operand.vmem [shape: f32[8,1], index: 2, kind: input, shape index: {}]
  %s3 = inlined_call_operand.hbm [shape: f32[1,1], index: 3, kind: output, shape index: {}]
  %s4 = sld [smem:[#allocation0]]
  $region30: #{tpu_custom_call.1} parent=0
    _
  %s6 = ssub.s32 1, %s4
  %s7 = scalar_select 0, %s6, %s4
  $region1: #{tpu_custom_call.1} parent=0
    #allocation2 [shape = 'u8[512]{0}', space=vmem, size = 0x400, scoped, tag = 'output window, operand 0, single buffered']
    #allocation3 [shape = 's32[1]{0}', space=sflag, size = 0x4, scoped, tag = 'scoped memory for tpu_custom_call.1']
    %8 = vsyncpa [#allocation3], 0
    // Predicated region
    $region2: #{tpu_custom_call.1} parent=1 // pred_check
      _
    $region3: #{tpu_custom_call.1} parent=1 // pred_check_branch
      %10 = sbr.rel (0) target = $region5
    $region4: #{tpu_custom_call.1} parent=1 // pred_region
      _
    $region5: #{tpu_custom_call.1} parent=1 // pred_fallthru
      _
    // Predicated region
    $region6: #{tpu_custom_call.1} parent=1 // pred_check
      _
    $region7: #{tpu_custom_call.1} parent=1 // pred_check_branch
      %12 = sbr.rel (0) target = $region9
    $region8: #{tpu_custom_call.1} parent=1 // pred_region
      _
    $region9: #{tpu_custom_call.1} parent=1 // pred_fallthru
      _
    // Predicated region
    $region10: #{tpu_custom_call.1} parent=1 // pred_check
      _
    $region11: #{tpu_custom_call.1} parent=1 // pred_check_branch
      %14 = sbr.rel (0) target = $region13
    $region12: #{tpu_custom_call.1} parent=1 // pred_region
      _
    $region13: #{tpu_custom_call.1} parent=1 // pred_fallthru
      _
    %p15 = scmp.eq.s32.totalorder 0, 0
    // Predicated region
    $region14: #{tpu_custom_call.1} parent=1 // pred_check
      %p16 = pneg %p15
    $region15: #{tpu_custom_call.1} parent=1 // pred_check_branch
      %18 = sbr.rel (%p16) target = $region17
    $region16: #{tpu_custom_call.1} parent=1 // pred_region
      %vm19 = vcmask 0
      %20 = vst.msk [vmem:[#allocation2] sm:$0x1] %vm19, 0.0
    $region17: #{tpu_custom_call.1} parent=1 // pred_fallthru
      _
    %v21 = vld [vmem:[%s0] sm:$0xff]
    %v22 = vld [vmem:[%s1] sm:$0xff]
    %v23 = vld [vmem:[%s2] sm:$0xff]
    %vm24 = vcmask 23552
    %v25 = vsel %vm24, %v21, -inf
    %26 = vmax.xlane.f32.xlu0 %v25
    %v27 = vpop.xlane.xlu0 %26
    %v28 = vsub.f32 %v21, %v27
    %v29 = vmul.f32 %v28, 1.442695
    %v30 = vpow.pop %v29
    %v31 = vsel %vm24, %v30, 0.0
    %32 = vadd.xlane.f32.xlu0 %v31
    %v33 = vpop.xlane.xlu0 %32
    %v34 = vlog2.pop %v33
    %v35 = vmul.f32 %v34, 0.6931472
    %v36 = vlaneseq
    %v37 = vand.u32 %v36, 127
    %38 = vset.pattern.permute.xlu0 0
    %39 = vperm.xlu0 %38, %v22
    %v40 = vpop.permute.xlu0 %39
    %vm41 = vcmp.eq.s32.totalorder %v37, %v40
    %v42 = vsel %vm41, 1, 0
    %v43 = vcvt.s32.f32 %v42
    %v44 = vmul.f32 %v28, %v43
    %v45 = vsel %vm24, %v44, 0.0
    %46 = vadd.xlane.f32.xlu0 %v45
    %v47 = vpop.xlane.xlu0 %46
    %v48 = vsub.f32 %v47, %v35
    %v49 = vmul.f32 %v48, 1.442695
    %v50 = vpow.pop %v49
    %v51 = vsub.f32 1.0, %v50
    %v52 = vmul.f32 %v51, %v51
    %v53 = vsub.f32 0.0, %v23
    %v54 = vmul.f32 %v53, %v52
    %v55 = vmul.f32 %v54, %v48
    %v56 = vlaneseq
    %v57 = vshrl.u32 %v56, 7
    %s58 = smul.u32 0, 8
    %v59 = vstv %s58
    %v60 = vadd.s32 %v57, %v59
    %vm61 = vcmp.lt.s32.totalorder %v60, 8
    %v62 = vsel %vm61, %v55, 0.0
    %v63 = vld [vmem:[#allocation2] sm:$0x1]
    %vm64 = vcmask 7168
    %v65 = vsel %vm64, %v62, 0.0
    %66 = vadd.xlane.f32.xlu0 %v65
    %v67 = vpop.xlane.xlu0 %66
    %v68 = vrot.slane %v67, 4
    %v69 = vadd.f32 %v67, %v68
    %v70 = vrot.slane %v69, 2
    %v71 = vadd.f32 %v69, %v70
    %v72 = vrot.slane %v71, 1
    %v73 = vadd.f32 %v71, %v72
    %s74 = vtos %v73
    %v75 = vstv %s74
    %v76 = vadd.f32 %v63, %v75
    %vm77 = vcmask 0
    %78 = vst.msk [vmem:[#allocation2] sm:$0x1] %vm77, %v76
    // Predicated region
    $region18: #{tpu_custom_call.1} parent=1 // pred_check
      %p79 = pneg %p15
    $region19: #{tpu_custom_call.1} parent=1 // pred_check_branch
      %81 = sbr.rel (%p79) target = $region21
    $region20: #{tpu_custom_call.1} parent=1 // pred_region
      %v82 = vld [vmem:[#allocation2] sm:$0x1]
      %v83 = vmul.f32 %v82, 0.125
      %84 = vst.msk [vmem:[#allocation2] sm:$0x1] %vm77, %v83
    $region21: #{tpu_custom_call.1} parent=1 // pred_fallthru
      _
    // Predicated region
    $region22: #{tpu_custom_call.1} parent=1 // pred_check
      _
    $region23: #{tpu_custom_call.1} parent=1 // pred_check_branch
      %86 = sbr.rel (0) target = $region25
    $region24: #{tpu_custom_call.1} parent=1 // pred_region
      %s88 = ssub.s32 16, 16
      %89 = vsyncadd [#allocation3], %s88
      %s91 = sshll.u32 [#allocation2], 4
      %s92 = int_to_ptr.vmem [resolvable:$true] %s91
      %94 = dma.vmem_to_hbm [thread:$0]  %s92, 16, %s3, [#allocation3]
    $region25: #{tpu_custom_call.1} parent=1 // pred_fallthru
      _
    // Predicated region
    $region26: #{tpu_custom_call.1} parent=1 // pred_check
      _
    $region27: #{tpu_custom_call.1} parent=1 // pred_check_branch
      %96 = sbr.rel (0) target = $region29
    $region28: #{tpu_custom_call.1} parent=1 // pred_region
      %97 = dma.done [#allocation3], 16
    $region29: #{tpu_custom_call.1} parent=1 // pred_fallthru
      _
    %98 = vsyncpa [#allocation3], 1

</llo_original>
